<compile_context>
chip_gen: v5e
topology: v5e:2x2
jax: 0.10.0
libtpu: 0.0.40
codegen_flags: <defaults>
</compile_context>

<pallas_src>
import jax
import jax.numpy as jnp
from jax.experimental import pallas as pl
from jax.experimental.pallas import tpu as pltpu

N_IN = 2304       # 4 * 24 * 24, nn.Flatten(start_dim=1) of (B, 4, 24, 24)
H1, H2, H3 = 128, 64, 32
N_OUT = 7
N_OUT_PAD = 128   # lane-dense padded output width (multiple of 128)
DEFAULT_TB = 512  # batch rows per grid step


def mlp_kernel(x_ref, w1_ref, b1_ref, w2_ref, b2_ref, w3_ref, b3_ref,
               w4_ref, b4_ref, o_ref):
    # dense1 + relu  (MXU matmul, f32 accumulate; bias/ReLU on VPU)
    h = jnp.dot(x_ref[...], w1_ref[...], preferred_element_type=jnp.float32)
    h = jnp.maximum(h + b1_ref[...], 0.0)
    # dense2 + relu
    h = jnp.dot(h, w2_ref[...], preferred_element_type=jnp.float32)
    h = jnp.maximum(h + b2_ref[...], 0.0)
    # dense3 + relu
    h = jnp.dot(h, w3_ref[...], preferred_element_type=jnp.float32)
    h = jnp.maximum(h + b3_ref[...], 0.0)
    # final (no activation), lane-dense 128-wide unmasked store
    out = jnp.dot(h, w4_ref[...], preferred_element_type=jnp.float32) + b4_ref[...]
    o_ref[...] = out.astype(o_ref.dtype)


def _round_up(x, m):
    return ((x + m - 1) // m) * m


def fully_connected_nn(x, params, *, tb=DEFAULT_TB):
    """x: (B, C, H, W) with C*H*W == 2304.  Returns (B, 7) float32."""
    B = x.shape[0]
    x_flat = x.reshape(B, -1)  # nn.Flatten(start_dim=1); row-major, free in XLA
    assert x_flat.shape[1] == N_IN, x_flat.shape

    (w1, b1, w2, b2, w3, b3, w4, b4) = params

    # Lane-dense pad of the final layer: (32, 7) -> (32, 128), (1, 7) -> (1, 128).
    w4p = jnp.pad(w4, ((0, 0), (0, N_OUT_PAD - w4.shape[1])))
    b4p = jnp.pad(b4, ((0, 0), (0, N_OUT_PAD - b4.shape[1])))

    # Batch tile: multiple of 8 (sublane), at most `tb` rows per grid step.
    TB = min(tb, _round_up(B, 8))
    B_pad = _round_up(B, TB)
    if B_pad != B:
        x_flat = jnp.pad(x_flat, ((0, B_pad - B), (0, 0)))

    grid = (B_pad // TB,)

    x_spec = pl.BlockSpec((TB, N_IN), lambda i: (i, 0))
    out_spec = pl.BlockSpec((TB, N_OUT_PAD), lambda i: (i, 0))
    const = lambda i: (0, 0)  # weights/biases: same block every step -> VMEM-resident

    flops_per_row = 2 * (N_IN * H1 + H1 * H2 + H2 * H3 + H3 * N_OUT_PAD)
    bytes_params = 4 * (w1.size + b1.size + w2.size + b2.size +
                        w3.size + b3.size + w4p.size + b4p.size)
    cost = pl.CostEstimate(
        flops=flops_per_row * B_pad,
        transcendentals=0,
        bytes_accessed=4 * B_pad * (N_IN + N_OUT_PAD) + bytes_params,
    )

    out = pl.pallas_call(
        mlp_kernel,
        out_shape=jax.ShapeDtypeStruct((B_pad, N_OUT_PAD), jnp.float32),
        grid=grid,
        in_specs=[
            x_spec,
            pl.BlockSpec(w1.shape, const),
            pl.BlockSpec(b1.shape, const),
            pl.BlockSpec(w2.shape, const),
            pl.BlockSpec(b2.shape, const),
            pl.BlockSpec(w3.shape, const),
            pl.BlockSpec(b3.shape, const),
            pl.BlockSpec(w4p.shape, const),
            pl.BlockSpec(b4p.shape, const),
        ],
        out_specs=out_spec,
        compiler_params=pltpu.CompilerParams(
            dimension_semantics=("parallel",),      # v7x: shard batch tiles over 2 TCs
            vmem_limit_bytes=32 * 1024 * 1024,      # headroom for TB=512 double-buffers
        ),
        cost_estimate=cost,
    )(x_flat, w1, b1, w2, b2, w3, b3, w4p, b4p)

    # Drop batch padding and the lane padding of the final layer.
    return out[:B, :N_OUT]


def init_params(key):
    """Deterministic init mimicking torch.nn.Linear (uniform +/- 1/sqrt(fan_in)).

    Weights stored as (in_features, out_features); biases as (1, out_features),
    so the kernel computes x @ W + b directly on the MXU.
    """
    dims = [(N_IN, H1), (H1, H2), (H2, H3), (H3, N_OUT)]
    params = []
    for (fan_in, fan_out) in dims:
        key, kw, kb = jax.random.split(key, 3)
        bound = 1.0 / (fan_in ** 0.5)
        w = jax.random.uniform(kw, (fan_in, fan_out), jnp.float32, -bound, bound)
        b = jax.random.uniform(kb, (1, fan_out), jnp.float32, -bound, bound)
        params.append(w)
        params.append(b)
    return tuple(params)


def reference_forward(x, params):
    (w1, b1, w2, b2, w3, b3, w4, b4) = params
    h = x.reshape(x.shape[0], -1)
    h = jax.nn.relu(h @ w1 + b1)
    h = jax.nn.relu(h @ w2 + b2)
    h = jax.nn.relu(h @ w3 + b3)
    return h @ w4 + b4


if __name__ == "__main__":
    key = jax.random.PRNGKey(0)
    key, kx1, kx2 = jax.random.split(key, 3)
    params = init_params(key)

    # Small NCHW input consistent with flatten -> 2304 features: (2, 4, 24, 24).
    x_small = jax.random.normal(kx1, (2, 4, 24, 24), dtype=jnp.float32)
    out_small = jax.block_until_ready(fully_connected_nn(x_small, params))
    ref_small = reference_forward(x_small, params)
    assert out_small.shape == (2, N_OUT), out_small.shape
    assert jnp.allclose(out_small, ref_small, atol=1e-4, rtol=1e-4), "mismatch (B=2)"

    # Exercise batch padding / tail handling with a batch not divisible by 8.
    x_odd = jax.random.normal(kx2, (20, 4, 24, 24), dtype=jnp.float32)
    out_odd = jax.block_until_ready(fully_connected_nn(x_odd, params))
    ref_odd = reference_forward(x_odd, params)
    assert out_odd.shape == (20, N_OUT), out_odd.shape
    assert jnp.allclose(out_odd, ref_odd, atol=1e-4, rtol=1e-4), "mismatch (B=20)"

    print("KERNEL_OK")
</pallas_src>

<mosaic_0001>
module attributes {stable_mosaic.version = 11 : i64} {
  func.func @mlp_kernel(%arg0: i32, %arg1: memref<8x2304xf32, #tpu.memory_space<vmem>>, %arg2: memref<2304x128xf32, #tpu.memory_space<vmem>>, %arg3: memref<1x128xf32, #tpu.memory_space<vmem>>, %arg4: memref<128x64xf32, #tpu.memory_space<vmem>>, %arg5: memref<1x64xf32, #tpu.memory_space<vmem>>, %arg6: memref<64x32xf32, #tpu.memory_space<vmem>>, %arg7: memref<1x32xf32, #tpu.memory_space<vmem>>, %arg8: memref<32x128xf32, #tpu.memory_space<vmem>>, %arg9: memref<1x128xf32, #tpu.memory_space<vmem>>, %arg10: memref<8x128xf32, #tpu.memory_space<vmem>>) attributes {dimension_semantics = [#tpu.dimension_semantics<parallel>], iteration_bounds = array<i64: 1>, scalar_prefetch = 0 : i64, scratch_operands = 0 : i64, tpu.core_type = #tpu.core_type<tc>, window_params = [{transform_indices = @transform_0, window_bounds = array<i64: 8, 2304>}, {pipeline_mode = #tpu.pipeline_mode<synchronous>, transform_indices = @transform_1, window_bounds = array<i64: 2304, 128>}, {pipeline_mode = #tpu.pipeline_mode<synchronous>, transform_indices = @transform_2, window_bounds = array<i64: 1, 128>}, {pipeline_mode = #tpu.pipeline_mode<synchronous>, transform_indices = @transform_3, window_bounds = array<i64: 128, 64>}, {pipeline_mode = #tpu.pipeline_mode<synchronous>, transform_indices = @transform_4, window_bounds = array<i64: 1, 64>}, {pipeline_mode = #tpu.pipeline_mode<synchronous>, transform_indices = @transform_5, window_bounds = array<i64: 64, 32>}, {pipeline_mode = #tpu.pipeline_mode<synchronous>, transform_indices = @transform_6, window_bounds = array<i64: 1, 32>}, {pipeline_mode = #tpu.pipeline_mode<synchronous>, transform_indices = @transform_7, window_bounds = array<i64: 32, 128>}, {pipeline_mode = #tpu.pipeline_mode<synchronous>, transform_indices = @transform_8, window_bounds = array<i64: 1, 128>}, {transform_indices = @transform_9, window_bounds = array<i64: 8, 128>}]} {
    %c0 = arith.constant 0 : index
    %c0_0 = arith.constant 0 : index
    %0 = vector.load %arg1[%c0, %c0_0] : memref<8x2304xf32, #tpu.memory_space<vmem>>, vector<8x2304xf32>
    %c0_1 = arith.constant 0 : index
    %c0_2 = arith.constant 0 : index
    %1 = vector.load %arg2[%c0_1, %c0_2] : memref<2304x128xf32, #tpu.memory_space<vmem>>, vector<2304x128xf32>
    %cst = arith.constant dense<0.000000e+00> : vector<8x128xf32>
    %2 = tpu.matmul %0, %1, %cst {dimension_numbers = #tpu.dot_dimension_numbers<[1], [0], [0], [1], [0, 0, 1, 1], [], []>} : vector<8x2304xf32>, vector<2304x128xf32>, vector<8x128xf32> -> vector<8x128xf32>
    %c0_3 = arith.constant 0 : index
    %c0_4 = arith.constant 0 : index
    %3 = vector.load %arg3[%c0_3, %c0_4] : memref<1x128xf32, #tpu.memory_space<vmem>>, vector<1x128xf32>
    %4 = vector.broadcast %3 : vector<1x128xf32> to vector<8x128xf32>
    %5 = arith.addf %2, %4 : vector<8x128xf32>
    %cst_5 = arith.constant 0.000000e+00 : f32
    %6 = vector.broadcast %cst_5 : f32 to vector<8x128xf32>
    %7 = arith.maximumf %5, %6 : vector<8x128xf32>
    %c0_6 = arith.constant 0 : index
    %c0_7 = arith.constant 0 : index
    %8 = vector.load %arg4[%c0_6, %c0_7] : memref<128x64xf32, #tpu.memory_space<vmem>>, vector<128x64xf32>
    %cst_8 = arith.constant dense<0.000000e+00> : vector<8x64xf32>
    %9 = tpu.matmul %7, %8, %cst_8 {dimension_numbers = #tpu.dot_dimension_numbers<[1], [0], [0], [1], [0, 0, 1, 1], [], []>} : vector<8x128xf32>, vector<128x64xf32>, vector<8x64xf32> -> vector<8x64xf32>
    %c0_9 = arith.constant 0 : index
    %c0_10 = arith.constant 0 : index
    %10 = vector.load %arg5[%c0_9, %c0_10] : memref<1x64xf32, #tpu.memory_space<vmem>>, vector<1x64xf32>
    %11 = vector.broadcast %10 : vector<1x64xf32> to vector<8x64xf32>
    %12 = arith.addf %9, %11 : vector<8x64xf32>
    %cst_11 = arith.constant 0.000000e+00 : f32
    %13 = vector.broadcast %cst_11 : f32 to vector<8x64xf32>
    %14 = arith.maximumf %12, %13 : vector<8x64xf32>
    %c0_12 = arith.constant 0 : index
    %c0_13 = arith.constant 0 : index
    %15 = vector.load %arg6[%c0_12, %c0_13] : memref<64x32xf32, #tpu.memory_space<vmem>>, vector<64x32xf32>
    %cst_14 = arith.constant dense<0.000000e+00> : vector<8x32xf32>
    %16 = tpu.matmul %14, %15, %cst_14 {dimension_numbers = #tpu.dot_dimension_numbers<[1], [0], [0], [1], [0, 0, 1, 1], [], []>} : vector<8x64xf32>, vector<64x32xf32>, vector<8x32xf32> -> vector<8x32xf32>
    %c0_15 = arith.constant 0 : index
    %c0_16 = arith.constant 0 : index
    %17 = vector.load %arg7[%c0_15, %c0_16] : memref<1x32xf32, #tpu.memory_space<vmem>>, vector<1x32xf32>
    %18 = vector.broadcast %17 : vector<1x32xf32> to vector<8x32xf32>
    %19 = arith.addf %16, %18 : vector<8x32xf32>
    %cst_17 = arith.constant 0.000000e+00 : f32
    %20 = vector.broadcast %cst_17 : f32 to vector<8x32xf32>
    %21 = arith.maximumf %19, %20 : vector<8x32xf32>
    %c0_18 = arith.constant 0 : index
    %c0_19 = arith.constant 0 : index
    %22 = vector.load %arg8[%c0_18, %c0_19] : memref<32x128xf32, #tpu.memory_space<vmem>>, vector<32x128xf32>
    %cst_20 = arith.constant dense<0.000000e+00> : vector<8x128xf32>
    %23 = tpu.matmul %21, %22, %cst_20 {dimension_numbers = #tpu.dot_dimension_numbers<[1], [0], [0], [1], [0, 0, 1, 1], [], []>} : vector<8x32xf32>, vector<32x128xf32>, vector<8x128xf32> -> vector<8x128xf32>
    %c0_21 = arith.constant 0 : index
    %c0_22 = arith.constant 0 : index
    %24 = vector.load %arg9[%c0_21, %c0_22] : memref<1x128xf32, #tpu.memory_space<vmem>>, vector<1x128xf32>
    %25 = vector.broadcast %24 : vector<1x128xf32> to vector<8x128xf32>
    %26 = arith.addf %23, %25 : vector<8x128xf32>
    %c0_23 = arith.constant 0 : index
    %c0_24 = arith.constant 0 : index
    %27 = vector.load %arg10[%c0_23, %c0_24] : memref<8x128xf32, #tpu.memory_space<vmem>>, vector<8x128xf32>
    tpu.vector_store %arg10[%c0_23, %c0_24], %26 {strides = array<i32>} : memref<8x128xf32, #tpu.memory_space<vmem>>, vector<8x128xf32>,
    return
  }
  func.func @transform_0(%arg0: i32) -> (i32, i32) {
    %c0_i32 = arith.constant 0 : i32
    %c0_i32_0 = arith.constant 0 : i32
    return %arg0, %c0_i32 : i32, i32
  }
  func.func @transform_1(%arg0: i32) -> (i32, i32) {
    %c0_i32 = arith.constant 0 : i32
    %c0_i32_0 = arith.constant 0 : i32
    %c0_i32_1 = arith.constant 0 : i32
    return %c0_i32, %c0_i32_0 : i32, i32
  }
  func.func @transform_2(%arg0: i32) -> (i32, i32) {
    %c0_i32 = arith.constant 0 : i32
    %c0_i32_0 = arith.constant 0 : i32
    %c0_i32_1 = arith.constant 0 : i32
    return %c0_i32, %c0_i32_0 : i32, i32
  }
  func.func @transform_3(%arg0: i32) -> (i32, i32) {
    %c0_i32 = arith.constant 0 : i32
    %c0_i32_0 = arith.constant 0 : i32
    %c0_i32_1 = arith.constant 0 : i32
    return %c0_i32, %c0_i32_0 : i32, i32
  }
  func.func @transform_4(%arg0: i32) -> (i32, i32) {
    %c0_i32 = arith.constant 0 : i32
    %c0_i32_0 = arith.constant 0 : i32
    %c0_i32_1 = arith.constant 0 : i32
    return %c0_i32, %c0_i32_0 : i32, i32
  }
  func.func @transform_5(%arg0: i32) -> (i32, i32) {
    %c0_i32 = arith.constant 0 : i32
    %c0_i32_0 = arith.constant 0 : i32
    %c0_i32_1 = arith.constant 0 : i32
    return %c0_i32, %c0_i32_0 : i32, i32
  }
  func.func @transform_6(%arg0: i32) -> (i32, i32) {
    %c0_i32 = arith.constant 0 : i32
    %c0_i32_0 = arith.constant 0 : i32
    %c0_i32_1 = arith.constant 0 : i32
    return %c0_i32, %c0_i32_0 : i32, i32
  }
  func.func @transform_7(%arg0: i32) -> (i32, i32) {
    %c0_i32 = arith.constant 0 : i32
    %c0_i32_0 = arith.constant 0 : i32
    %c0_i32_1 = arith.constant 0 : i32
    return %c0_i32, %c0_i32_0 : i32, i32
  }
  func.func @transform_8(%arg0: i32) -> (i32, i32) {
    %c0_i32 = arith.constant 0 : i32
    %c0_i32_0 = arith.constant 0 : i32
    %c0_i32_1 = arith.constant 0 : i32
    return %c0_i32, %c0_i32_0 : i32, i32
  }
  func.func @transform_9(%arg0: i32) -> (i32, i32) {
    %c0_i32 = arith.constant 0 : i32
    %c0_i32_0 = arith.constant 0 : i32
    return %arg0, %c0_i32 : i32, i32
  }
}

</mosaic_0001>

<llo_original>
// kernel: tpu_custom_call.1
$region0: #{tpu_custom_call.1}
  #allocation0 [shape = 'u32[]', space=smem, size = 0x4, offset = 0x4, fixed_abs, tag = 'smem constant byte address 0x4 - core index']
  #allocation1 [shape = 'u32[72,128]{1,0:T(1,128)}', space=vmem, size = 0x9000, scoped, tag = 'internal scratch']
  %s0 = inlined_call_operand.hbm [shape: f32[8,2304], index: 0, kind: input, shape index: {}]
  %s1 = inlined_call_operand.hbm [shape: f32[2304,128], index: 1, kind: input, shape index: {}]
  %s2 = inlined_call_operand.hbm [shape: f32[1,128], index: 2, kind: input, shape index: {}]
  %s3 = inlined_call_operand.vmem [shape: f32[128,64], index: 3, kind: input, shape index: {}]
  %s4 = inlined_call_operand.hbm [shape: f32[1,64], index: 4, kind: input, shape index: {}]
  %s5 = inlined_call_operand.vmem [shape: f32[64,32], index: 5, kind: input, shape index: {}]
  %s6 = inlined_call_operand.hbm [shape: f32[1,32], index: 6, kind: input, shape index: {}]
  %s7 = inlined_call_operand.hbm [shape: f32[32,128], index: 7, kind: input, shape index: {}]
  %s8 = inlined_call_operand.hbm [shape: f32[1,128], index: 8, kind: input, shape index: {}]
  %s9 = inlined_call_operand.hbm [shape: f32[8,128], index: 9, kind: output, shape index: {}]
  %s10 = sld [smem:[#allocation0]]
  $region74: #{tpu_custom_call.1} parent=0
    _
  %s12 = ssub.s32 1, %s10
  %s13 = scalar_select 0, %s12, %s10
  $region1: #{tpu_custom_call.1} parent=0
    #allocation2 [shape = 'u8[73728]{0}', space=vmem, size = 0x12000, scoped, tag = 'input window, operand 0, single buffered']
    #allocation3 [shape = 's32[1]{0}', space=sflag, size = 0x4, scoped, tag = 'scoped memory for tpu_custom_call.1']
    #allocation4 [shape = 's32[1]{0}', space=sflag, size = 0x4, scoped, tag = 'scoped memory for tpu_custom_call.1']
    #allocation5 [shape = 'u8[1179648]{0}', space=vmem, size = 0x120000, scoped, tag = 'input window, operand 1, single buffered']
    #allocation6 [shape = 's32[1]{0}', space=sflag, size = 0x4, scoped, tag = 'scoped memory for tpu_custom_call.1']
    #allocation7 [shape = 'u8[512]{0}', space=vmem, size = 0x400, scoped, tag = 'input window, operand 2, single buffered']
    #allocation8 [shape = 'u8[512]{0}', space=vmem, size = 0x400, scoped, tag = 'input window, operand 4, single buffered']
    #allocation9 [shape = 's32[1]{0}', space=sflag, size = 0x4, scoped, tag = 'scoped memory for tpu_custom_call.1']
    #allocation10 [shape = 'u8[512]{0}', space=vmem, size = 0x400, scoped, tag = 'input window, operand 6, single buffered']
    #allocation11 [shape = 'u8[16384]{0}', space=vmem, size = 0x4000, scoped, tag = 'input window, operand 7, single buffered']
    #allocation12 [shape = 's32[1]{0}', space=sflag, size = 0x4, scoped, tag = 'scoped memory for tpu_custom_call.1']
    #allocation13 [shape = 'u8[512]{0}', space=vmem, size = 0x400, scoped, tag = 'input window, operand 8, single buffered']
    #allocation14 [shape = 'u8[4096]{0}', space=vmem, size = 0x1000, scoped, tag = 'output window, operand 0, single buffered']
    %14 = vsyncpa [#allocation3], 0
    %15 = vsyncpa [#allocation6], 0
    %16 = vsyncpa [#allocation9], 0
    %17 = vsyncpa [#allocation12], 0
    %18 = vsyncpa [#allocation4], 0
    // Predicated region
    $region2: #{tpu_custom_call.1} parent=1 // pred_check
      _
    $region3: #{tpu_custom_call.1} parent=1 // pred_check_branch
      %20 = sbr.rel (0) target = $region5
    $region4: #{tpu_custom_call.1} parent=1 // pred_region
      %22 = vsyncadd [#allocation3], 0
      %s24 = sshll.u32 %s0, 4
      %s25 = int_to_ptr.hbm [resolvable:$true] %s24
      %s26 = sshll.u32 [#allocation2], 4
      %s27 = int_to_ptr.vmem [resolvable:$true] %s26
      %29 = dma.hbm_to_vmem [thread:$0]  %s25, 2304, %s27, [#allocation3]
    $region5: #{tpu_custom_call.1} parent=1 // pred_fallthru
      _
    // Predicated region
    $region6: #{tpu_custom_call.1} parent=1 // pred_check
      _
    $region7: #{tpu_custom_call.1} parent=1 // pred_check_branch
      %31 = sbr.rel (0) target = $region9
    $region8: #{tpu_custom_call.1} parent=1 // pred_region
      %33 = vsyncadd [#allocation6], 0
      %s34 = sshll.u32 %s1, 4
      %s35 = int_to_ptr.hbm [resolvable:$true] %s34
      %s36 = sshll.u32 [#allocation5], 4
      %s37 = int_to_ptr.vmem [resolvable:$true] %s36
      %42 = dma.hbm_to_vmem [thread:$0]  %s35, 36864, %s37, [#allocation6], 128, 128, 8
    $region9: #{tpu_custom_call.1} parent=1 // pred_fallthru
      _
    // Predicated region
    $region10: #{tpu_custom_call.1} parent=1 // pred_check
      _
    $region11: #{tpu_custom_call.1} parent=1 // pred_check_branch
      %44 = sbr.rel (0) target = $region13
    $region12: #{tpu_custom_call.1} parent=1 // pred_region
      %46 = vsyncadd [#allocation6], 0
      %s48 = sshll.u32 %s2, 4
      %s49 = int_to_ptr.hbm [resolvable:$true] %s48
      %s50 = sshll.u32 [#allocation7], 4
      %s51 = int_to_ptr.vmem [resolvable:$true] %s50
      %53 = dma.hbm_to_vmem [thread:$0]  %s49, 16, %s51, [#allocation6]
    $region13: #{tpu_custom_call.1} parent=1 // pred_fallthru
      _
    // Predicated region
    $region14: #{tpu_custom_call.1} parent=1 // pred_check
      _
    $region15: #{tpu_custom_call.1} parent=1 // pred_check_branch
      %55 = sbr.rel (0) target = $region17
    $region16: #{tpu_custom_call.1} parent=1 // pred_region
      _
    $region17: #{tpu_custom_call.1} parent=1 // pred_fallthru
      _
    // Predicated region
    $region18: #{tpu_custom_call.1} parent=1 // pred_check
      _
    $region19: #{tpu_custom_call.1} parent=1 // pred_check_branch
      %57 = sbr.rel (0) target = $region21
    $region20: #{tpu_custom_call.1} parent=1 // pred_region
      %59 = vsyncadd [#allocation9], 0
      %s61 = sshll.u32 %s4, 4
      %s62 = int_to_ptr.hbm [resolvable:$true] %s61
      %s63 = sshll.u32 [#allocation8], 4
      %s64 = int_to_ptr.vmem [resolvable:$true] %s63
      %66 = dma.hbm_to_vmem [thread:$0]  %s62, 16, %s64, [#allocation9]
    $region21: #{tpu_custom_call.1} parent=1 // pred_fallthru
      _
    // Predicated region
    $region22: #{tpu_custom_call.1} parent=1 // pred_check
      _
    $region23: #{tpu_custom_call.1} parent=1 // pred_check_branch
      %68 = sbr.rel (0) target = $region25
    $region24: #{tpu_custom_call.1} parent=1 // pred_region
      _
    $region25: #{tpu_custom_call.1} parent=1 // pred_fallthru
      _
    // Predicated region
    $region26: #{tpu_custom_call.1} parent=1 // pred_check
      _
    $region27: #{tpu_custom_call.1} parent=1 // pred_check_branch
      %70 = sbr.rel (0) target = $region29
    $region28: #{tpu_custom_call.1} parent=1 // pred_region
      %72 = vsyncadd [#allocation9], 0
      %s74 = sshll.u32 %s6, 4
      %s75 = int_to_ptr.hbm [resolvable:$true] %s74
      %s76 = sshll.u32 [#allocation10], 4
      %s77 = int_to_ptr.vmem [resolvable:$true] %s76
      %79 = dma.hbm_to_vmem [thread:$0]  %s75, 16, %s77, [#allocation9]
    $region29: #{tpu_custom_call.1} parent=1 // pred_fallthru
      _
    // Predicated region
    $region30: #{tpu_custom_call.1} parent=1 // pred_check
      _
    $region31: #{tpu_custom_call.1} parent=1 // pred_check_branch
      %81 = sbr.rel (0) target = $region33
    $region32: #{tpu_custom_call.1} parent=1 // pred_region
      %83 = vsyncadd [#allocation12], 0
      %s84 = sshll.u32 %s7, 4
      %s85 = int_to_ptr.hbm [resolvable:$true] %s84
      %s86 = sshll.u32 [#allocation11], 4
      %s87 = int_to_ptr.vmem [resolvable:$true] %s86
      %92 = dma.hbm_to_vmem [thread:$0]  %s85, 512, %s87, [#allocation12], 128, 128, 8
    $region33: #{tpu_custom_call.1} parent=1 // pred_fallthru
      _
    // Predicated region
    $region34: #{tpu_custom_call.1} parent=1 // pred_check
      _
    $region35: #{tpu_custom_call.1} parent=1 // pred_check_branch
      %94 = sbr.rel (0) target = $region37
    $region36: #{tpu_custom_call.1} parent=1 // pred_region
      %96 = vsyncadd [#allocation12], 0
      %s98 = sshll.u32 %s8, 4
      %s99 = int_to_ptr.hbm [resolvable:$true] %s98
      %s100 = sshll.u32 [#allocation13], 4
      %s101 = int_to_ptr.vmem [resolvable:$true] %s100
      %103 = dma.hbm_to_vmem [thread:$0]  %s99, 16, %s101, [#allocation12]
    $region37: #{tpu_custom_call.1} parent=1 // pred_fallthru
      _
    // Predicated region
    $region38: #{tpu_custom_call.1} parent=1 // pred_check
      _
    $region39: #{tpu_custom_call.1} parent=1 // pred_check_branch
      %105 = sbr.rel (0) target = $region41
    $region40: #{tpu_custom_call.1} parent=1 // pred_region
      %107 = dma.done [#allocation3], 2304
    $region41: #{tpu_custom_call.1} parent=1 // pred_fallthru
      _
    // Predicated region
    $region42: #{tpu_custom_call.1} parent=1 // pred_check
      _
    $region43: #{tpu_custom_call.1} parent=1 // pred_check_branch
      %109 = sbr.rel (0) target = $region45
    $region44: #{tpu_custom_call.1} parent=1 // pred_region
      %111 = dma.done [#allocation6], 36864
    $region45: #{tpu_custom_call.1} parent=1 // pred_fallthru
      _
    // Predicated region
    $region46: #{tpu_custom_call.1} parent=1 // pred_check
      _
    $region47: #{tpu_custom_call.1} parent=1 // pred_check_branch
      %113 = sbr.rel (0) target = $region49
    $region48: #{tpu_custom_call.1} parent=1 // pred_region
      %115 = dma.done [#allocation6], 16
    $region49: #{tpu_custom_call.1} parent=1 // pred_fallthru
      _
    // Predicated region
    $region50: #{tpu_custom_call.1} parent=1 // pred_check
      _
    $region51: #{tpu_custom_call.1} parent=1 // pred_check_branch
      %117 = sbr.rel (0) target = $region53
    $region52: #{tpu_custom_call.1} parent=1 // pred_region
      %119 = dma.done [#allocation9], 16
    $region53: #{tpu_custom_call.1} parent=1 // pred_fallthru
      _
    // Predicated region
    $region54: #{tpu_custom_call.1} parent=1 // pred_check
      _
    $region55: #{tpu_custom_call.1} parent=1 // pred_check_branch
      %121 = sbr.rel (0) target = $region57
    $region56: #{tpu_custom_call.1} parent=1 // pred_region
      %123 = dma.done [#allocation9], 16
    $region57: #{tpu_custom_call.1} parent=1 // pred_fallthru
      _
    // Predicated region
    $region58: #{tpu_custom_call.1} parent=1 // pred_check
      _
    $region59: #{tpu_custom_call.1} parent=1 // pred_check_branch
      %125 = sbr.rel (0) target = $region61
    $region60: #{tpu_custom_call.1} parent=1 // pred_region
      %127 = dma.done [#allocation12], 512
    $region61: #{tpu_custom_call.1} parent=1 // pred_fallthru
      _
    // Predicated region
    $region62: #{tpu_custom_call.1} parent=1 // pred_check
      _
    $region63: #{tpu_custom_call.1} parent=1 // pred_check_branch
      %129 = sbr.rel (0) target = $region65
    $region64: #{tpu_custom_call.1} parent=1 // pred_region
      %131 = dma.done [#allocation12], 16
    $region65: #{tpu_custom_call.1} parent=1 // pred_fallthru
      _
    %v132 = vld [vmem:[#allocation2] sm:$0xff]
    %v133 = vld [vmem:[#allocation2 + $0x8] sm:$0xff]
    %v134 = vld [vmem:[#allocation2 + $0x10] sm:$0xff]
    %v135 = vld [vmem:[#allocation2 + $0x18] sm:$0xff]
    %v136 = vld [vmem:[#allocation2 + $0x20] sm:$0xff]
    %v137 = vld [vmem:[#allocation2 + $0x28] sm:$0xff]
    %v138 = vld [vmem:[#allocation2 + $0x30] sm:$0xff]
    %v139 = vld [vmem:[#allocation2 + $0x38] sm:$0xff]
    %v140 = vld [vmem:[#allocation2 + $0x40] sm:$0xff]
    %v141 = vld [vmem:[#allocation2 + $0x48] sm:$0xff]
    %v142 = vld [vmem:[#allocation2 + $0x50] sm:$0xff]
    %v143 = vld [vmem:[#allocation2 + $0x58] sm:$0xff]
    %v144 = vld [vmem:[#allocation2 + $0x60] sm:$0xff]
    %v145 = vld [vmem:[#allocation2 + $0x68] sm:$0xff]
    %v146 = vld [vmem:[#allocation2 + $0x70] sm:$0xff]
    %v147 = vld [vmem:[#allocation2 + $0x78] sm:$0xff]
    %v148 = vld [vmem:[#allocation2 + $0x80] sm:$0xff]
    %v149 = vld [vmem:[#allocation2 + $0x88] sm:$0xff]
    %v150 = vld [vmem:[#allocation5] sm:$0xff]
    %v151 = vld [vmem:[#allocation5 + $0x8] sm:$0xff]
    %v152 = vld [vmem:[#allocation5 + $0x10] sm:$0xff]
    %v153 = vld [vmem:[#allocation5 + $0x18] sm:$0xff]
    %v154 = vld [vmem:[#allocation5 + $0x20] sm:$0xff]
    %v155 = vld [vmem:[#allocation5 + $0x28] sm:$0xff]
    %v156 = vld [vmem:[#allocation5 + $0x30] sm:$0xff]
    %v157 = vld [vmem:[#allocation5 + $0x38] sm:$0xff]
    %v158 = vld [vmem:[#allocation5 + $0x40] sm:$0xff]
    %v159 = vld [vmem:[#allocation5 + $0x48] sm:$0xff]
    %v160 = vld [vmem:[#allocation5 + $0x50] sm:$0xff]
    %v161 = vld [vmem:[#allocation5 + $0x58] sm:$0xff]
    %v162 = vld [vmem:[#allocation5 + $0x60] sm:$0xff]
    %v163 = vld [vmem:[#allocation5 + $0x68] sm:$0xff]
    %v164 = vld [vmem:[#allocation5 + $0x70] sm:$0xff]
    %v165 = vld [vmem:[#allocation5 + $0x78] sm:$0xff]
    %v166 = vld [vmem:[#allocation5 + $0x80] sm:$0xff]
    %v167 = vld [vmem:[#allocation5 + $0x88] sm:$0xff]
    %v168 = vld [vmem:[#allocation5 + $0x90] sm:$0xff]
    %v169 = vld [vmem:[#allocation5 + $0x98] sm:$0xff]
    %v170 = vld [vmem:[#allocation5 + $0xa0] sm:$0xff]
    %v171 = vld [vmem:[#allocation5 + $0xa8] sm:$0xff]
    %v172 = vld [vmem:[#allocation5 + $0xb0] sm:$0xff]
    %v173 = vld [vmem:[#allocation5 + $0xb8] sm:$0xff]
    %v174 = vld [vmem:[#allocation5 + $0xc0] sm:$0xff]
    %v175 = vld [vmem:[#allocation5 + $0xc8] sm:$0xff]
    %v176 = vld [vmem:[#allocation5 + $0xd0] sm:$0xff]
    %v177 = vld [vmem:[#allocation5 + $0xd8] sm:$0xff]
    %v178 = vld [vmem:[#allocation5 + $0xe0] sm:$0xff]
    %v179 = vld [vmem:[#allocation5 + $0xe8] sm:$0xff]
    %v180 = vld [vmem:[#allocation5 + $0xf0] sm:$0xff]
    %v181 = vld [vmem:[#allocation5 + $0xf8] sm:$0xff]
    %v182 = vld [vmem:[#allocation5 + $0x100] sm:$0xff]
    %v183 = vld [vmem:[#allocation5 + $0x108] sm:$0xff]
    %v184 = vld [vmem:[#allocation5 + $0x110] sm:$0xff]
    %v185 = vld [vmem:[#allocation5 + $0x118] sm:$0xff]
    %v186 = vld [vmem:[#allocation5 + $0x120] sm:$0xff]
    %v187 = vld [vmem:[#allocation5 + $0x128] sm:$0xff]
    %v188 = vld [vmem:[#allocation5 + $0x130] sm:$0xff]
    %v189 = vld [vmem:[#allocation5 + $0x138] sm:$0xff]
    %v190 = vld [vmem:[#allocation5 + $0x140] sm:$0xff]
    %v191 = vld [vmem:[#allocation5 + $0x148] sm:$0xff]
    %v192 = vld [vmem:[#allocation5 + $0x150] sm:$0xff]
    %v193 = vld [vmem:[#allocation5 + $0x158] sm:$0xff]
    %v194 = vld [vmem:[#allocation5 + $0x160] sm:$0xff]
    %v195 = vld [vmem:[#allocation5 + $0x168] sm:$0xff]
    %v196 = vld [vmem:[#allocation5 + $0x170] sm:$0xff]
    %v197 = vld [vmem:[#allocation5 + $0x178] sm:$0xff]
    %v198 = vld [vmem:[#allocation5 + $0x180] sm:$0xff]
    %v199 = vld [vmem:[#allocation5 + $0x188] sm:$0xff]
    %v200 = vld [vmem:[#allocation5 + $0x190] sm:$0xff]
    %v201 = vld [vmem:[#allocation5 + $0x198] sm:$0xff]
    %v202 = vld [vmem:[#allocation5 + $0x1a0] sm:$0xff]
    %v203 = vld [vmem:[#allocation5 + $0x1a8] sm:$0xff]
    %v204 = vld [vmem:[#allocation5 + $0x1b0] sm:$0xff]
    %v205 = vld [vmem:[#allocation5 + $0x1b8] sm:$0xff]
    %v206 = vld [vmem:[#allocation5 + $0x1c0] sm:$0xff]
    %v207 = vld [vmem:[#allocation5 + $0x1c8] sm:$0xff]
    %v208 = vld [vmem:[#allocation5 + $0x1d0] sm:$0xff]
    %v209 = vld [vmem:[#allocation5 + $0x1d8] sm:$0xff]
    %v210 = vld [vmem:[#allocation5 + $0x1e0] sm:$0xff]
    %v211 = vld [vmem:[#allocation5 + $0x1e8] sm:$0xff]
    %v212 = vld [vmem:[#allocation5 + $0x1f0] sm:$0xff]
    %v213 = vld [vmem:[#allocation5 + $0x1f8] sm:$0xff]
    %v214 = vld [vmem:[#allocation5 + $0x200] sm:$0xff]
    %v215 = vld [vmem:[#allocation5 + $0x208] sm:$0xff]
    %v216 = vld [vmem:[#allocation5 + $0x210] sm:$0xff]
    %v217 = vld [vmem:[#allocation5 + $0x218] sm:$0xff]
    %v218 = vld [vmem:[#allocation5 + $0x220] sm:$0xff]
    %v219 = vld [vmem:[#allocation5 + $0x228] sm:$0xff]
    %v220 = vld [vmem:[#allocation5 + $0x230] sm:$0xff]
    %v221 = vld [vmem:[#allocation5 + $0x238] sm:$0xff]
    %v222 = vld [vmem:[#allocation5 + $0x240] sm:$0xff]
    %v223 = vld [vmem:[#allocation5 + $0x248] sm:$0xff]
    %v224 = vld [vmem:[#allocation5 + $0x250] sm:$0xff]
    %v225 = vld [vmem:[#allocation5 + $0x258] sm:$0xff]
    %v226 = vld [vmem:[#allocation5 + $0x260] sm:$0xff]
    %v227 = vld [vmem:[#allocation5 + $0x268] sm:$0xff]
    %v228 = vld [vmem:[#allocation5 + $0x270] sm:$0xff]
    %v229 = vld [vmem:[#allocation5 + $0x278] sm:$0xff]
    %v230 = vld [vmem:[#allocation5 + $0x280] sm:$0xff]
    %v231 = vld [vmem:[#allocation5 + $0x288] sm:$0xff]
    %v232 = vld [vmem:[#allocation5 + $0x290] sm:$0xff]
    %v233 = vld [vmem:[#allocation5 + $0x298] sm:$0xff]
    %v234 = vld [vmem:[#allocation5 + $0x2a0] sm:$0xff]
    %v235 = vld [vmem:[#allocation5 + $0x2a8] sm:$0xff]
    %v236 = vld [vmem:[#allocation5 + $0x2b0] sm:$0xff]
    %v237 = vld [vmem:[#allocation5 + $0x2b8] sm:$0xff]
    %v238 = vld [vmem:[#allocation5 + $0x2c0] sm:$0xff]
    %v239 = vld [vmem:[#allocation5 + $0x2c8] sm:$0xff]
    %v240 = vld [vmem:[#allocation5 + $0x2d0] sm:$0xff]
    %v241 = vld [vmem:[#allocation5 + $0x2d8] sm:$0xff]
    %v242 = vld [vmem:[#allocation5 + $0x2e0] sm:$0xff]
    %v243 = vld [vmem:[#allocation5 + $0x2e8] sm:$0xff]
    %v244 = vld [vmem:[#allocation5 + $0x2f0] sm:$0xff]
    %v245 = vld [vmem:[#allocation5 + $0x2f8] sm:$0xff]
    %v246 = vld [vmem:[#allocation5 + $0x300] sm:$0xff]
    %v247 = vld [vmem:[#allocation5 + $0x308] sm:$0xff]
    %v248 = vld [vmem:[#allocation5 + $0x310] sm:$0xff]
    %v249 = vld [vmem:[#allocation5 + $0x318] sm:$0xff]
    %v250 = vld [vmem:[#allocation5 + $0x320] sm:$0xff]
    %v251 = vld [vmem:[#allocation5 + $0x328] sm:$0xff]
    %v252 = vld [vmem:[#allocation5 + $0x330] sm:$0xff]
    %v253 = vld [vmem:[#allocation5 + $0x338] sm:$0xff]
    %v254 = vld [vmem:[#allocation5 + $0x340] sm:$0xff]
    %v255 = vld [vmem:[#allocation5 + $0x348] sm:$0xff]
    %v256 = vld [vmem:[#allocation5 + $0x350] sm:$0xff]
    %v257 = vld [vmem:[#allocation5 + $0x358] sm:$0xff]
    %v258 = vld [vmem:[#allocation5 + $0x360] sm:$0xff]
    %v259 = vld [vmem:[#allocation5 + $0x368] sm:$0xff]
    %v260 = vld [vmem:[#allocation5 + $0x370] sm:$0xff]
    %v261 = vld [vmem:[#allocation5 + $0x378] sm:$0xff]
    %v262 = vld [vmem:[#allocation5 + $0x380] sm:$0xff]
    %v263 = vld [vmem:[#allocation5 + $0x388] sm:$0xff]
    %v264 = vld [vmem:[#allocation5 + $0x390] sm:$0xff]
    %v265 = vld [vmem:[#allocation5 + $0x398] sm:$0xff]
    %v266 = vld [vmem:[#allocation5 + $0x3a0] sm:$0xff]
    %v267 = vld [vmem:[#allocation5 + $0x3a8] sm:$0xff]
    %v268 = vld [vmem:[#allocation5 + $0x3b0] sm:$0xff]
    %v269 = vld [vmem:[#allocation5 + $0x3b8] sm:$0xff]
    %v270 = vld [vmem:[#allocation5 + $0x3c0] sm:$0xff]
    %v271 = vld [vmem:[#allocation5 + $0x3c8] sm:$0xff]
    %v272 = vld [vmem:[#allocation5 + $0x3d0] sm:$0xff]
    %v273 = vld [vmem:[#allocation5 + $0x3d8] sm:$0xff]
    %v274 = vld [vmem:[#allocation5 + $0x3e0] sm:$0xff]
    %v275 = vld [vmem:[#allocation5 + $0x3e8] sm:$0xff]
    %v276 = vld [vmem:[#allocation5 + $0x3f0] sm:$0xff]
    %v277 = vld [vmem:[#allocation5 + $0x3f8] sm:$0xff]
    %v278 = vld [vmem:[#allocation5 + $0x400] sm:$0xff]
    %v279 = vld [vmem:[#allocation5 + $0x408] sm:$0xff]
    %v280 = vld [vmem:[#allocation5 + $0x410] sm:$0xff]
    %v281 = vld [vmem:[#allocation5 + $0x418] sm:$0xff]
    %v282 = vld [vmem:[#allocation5 + $0x420] sm:$0xff]
    %v283 = vld [vmem:[#allocation5 + $0x428] sm:$0xff]
    %v284 = vld [vmem:[#allocation5 + $0x430] sm:$0xff]
    %v285 = vld [vmem:[#allocation5 + $0x438] sm:$0xff]
    %v286 = vld [vmem:[#allocation5 + $0x440] sm:$0xff]
    %v287 = vld [vmem:[#allocation5 + $0x448] sm:$0xff]
    %v288 = vld [vmem:[#allocation5 + $0x450] sm:$0xff]
    %v289 = vld [vmem:[#allocation5 + $0x458] sm:$0xff]
    %v290 = vld [vmem:[#allocation5 + $0x460] sm:$0xff]
    %v291 = vld [vmem:[#allocation5 + $0x468] sm:$0xff]
    %v292 = vld [vmem:[#allocation5 + $0x470] sm:$0xff]
    %v293 = vld [vmem:[#allocation5 + $0x478] sm:$0xff]
    %v294 = vld [vmem:[#allocation5 + $0x480] sm:$0xff]
    %v295 = vld [vmem:[#allocation5 + $0x488] sm:$0xff]
    %v296 = vld [vmem:[#allocation5 + $0x490] sm:$0xff]
    %v297 = vld [vmem:[#allocation5 + $0x498] sm:$0xff]
    %v298 = vld [vmem:[#allocation5 + $0x4a0] sm:$0xff]
    %v299 = vld [vmem:[#allocation5 + $0x4a8] sm:$0xff]
    %v300 = vld [vmem:[#allocation5 + $0x4b0] sm:$0xff]
    %v301 = vld [vmem:[#allocation5 + $0x4b8] sm:$0xff]
    %v302 = vld [vmem:[#allocation5 + $0x4c0] sm:$0xff]
    %v303 = vld [vmem:[#allocation5 + $0x4c8] sm:$0xff]
    %v304 = vld [vmem:[#allocation5 + $0x4d0] sm:$0xff]
    %v305 = vld [vmem:[#allocation5 + $0x4d8] sm:$0xff]
    %v306 = vld [vmem:[#allocation5 + $0x4e0] sm:$0xff]
    %v307 = vld [vmem:[#allocation5 + $0x4e8] sm:$0xff]
    %v308 = vld [vmem:[#allocation5 + $0x4f0] sm:$0xff]
    %v309 = vld [vmem:[#allocation5 + $0x4f8] sm:$0xff]
    %v310 = vld [vmem:[#allocation5 + $0x500] sm:$0xff]
    %v311 = vld [vmem:[#allocation5 + $0x508] sm:$0xff]
    %v312 = vld [vmem:[#allocation5 + $0x510] sm:$0xff]
    %v313 = vld [vmem:[#allocation5 + $0x518] sm:$0xff]
    %v314 = vld [vmem:[#allocation5 + $0x520] sm:$0xff]
    %v315 = vld [vmem:[#allocation5 + $0x528] sm:$0xff]
    %v316 = vld [vmem:[#allocation5 + $0x530] sm:$0xff]
    %v317 = vld [vmem:[#allocation5 + $0x538] sm:$0xff]
    %v318 = vld [vmem:[#allocation5 + $0x540] sm:$0xff]
    %v319 = vld [vmem:[#allocation5 + $0x548] sm:$0xff]
    %v320 = vld [vmem:[#allocation5 + $0x550] sm:$0xff]
    %v321 = vld [vmem:[#allocation5 + $0x558] sm:$0xff]
    %v322 = vld [vmem:[#allocation5 + $0x560] sm:$0xff]
    %v323 = vld [vmem:[#allocation5 + $0x568] sm:$0xff]
    %v324 = vld [vmem:[#allocation5 + $0x570] sm:$0xff]
    %v325 = vld [vmem:[#allocation5 + $0x578] sm:$0xff]
    %v326 = vld [vmem:[#allocation5 + $0x580] sm:$0xff]
    %v327 = vld [vmem:[#allocation5 + $0x588] sm:$0xff]
    %v328 = vld [vmem:[#allocation5 + $0x590] sm:$0xff]
    %v329 = vld [vmem:[#allocation5 + $0x598] sm:$0xff]
    %v330 = vld [vmem:[#allocation5 + $0x5a0] sm:$0xff]
    %v331 = vld [vmem:[#allocation5 + $0x5a8] sm:$0xff]
    %v332 = vld [vmem:[#allocation5 + $0x5b0] sm:$0xff]
    %v333 = vld [vmem:[#allocation5 + $0x5b8] sm:$0xff]
    %v334 = vld [vmem:[#allocation5 + $0x5c0] sm:$0xff]
    %v335 = vld [vmem:[#allocation5 + $0x5c8] sm:$0xff]
    %v336 = vld [vmem:[#allocation5 + $0x5d0] sm:$0xff]
    %v337 = vld [vmem:[#allocation5 + $0x5d8] sm:$0xff]
    %v338 = vld [vmem:[#allocation5 + $0x5e0] sm:$0xff]
    %v339 = vld [vmem:[#allocation5 + $0x5e8] sm:$0xff]
    %v340 = vld [vmem:[#allocation5 + $0x5f0] sm:$0xff]
    %v341 = vld [vmem:[#allocation5 + $0x5f8] sm:$0xff]
    %v342 = vld [vmem:[#allocation5 + $0x600] sm:$0xff]
    %v343 = vld [vmem:[#allocation5 + $0x608] sm:$0xff]
    %v344 = vld [vmem:[#allocation5 + $0x610] sm:$0xff]
    %v345 = vld [vmem:[#allocation5 + $0x618] sm:$0xff]
    %v346 = vld [vmem:[#allocation5 + $0x620] sm:$0xff]
    %v347 = vld [vmem:[#allocation5 + $0x628] sm:$0xff]
    %v348 = vld [vmem:[#allocation5 + $0x630] sm:$0xff]
    %v349 = vld [vmem:[#allocation5 + $0x638] sm:$0xff]
    %v350 = vld [vmem:[#allocation5 + $0x640] sm:$0xff]
    %v351 = vld [vmem:[#allocation5 + $0x648] sm:$0xff]
    %v352 = vld [vmem:[#allocation5 + $0x650] sm:$0xff]
    %v353 = vld [vmem:[#allocation5 + $0x658] sm:$0xff]
    %v354 = vld [vmem:[#allocation5 + $0x660] sm:$0xff]
    %v355 = vld [vmem:[#allocation5 + $0x668] sm:$0xff]
    %v356 = vld [vmem:[#allocation5 + $0x670] sm:$0xff]
    %v357 = vld [vmem:[#allocation5 + $0x678] sm:$0xff]
    %v358 = vld [vmem:[#allocation5 + $0x680] sm:$0xff]
    %v359 = vld [vmem:[#allocation5 + $0x688] sm:$0xff]
    %v360 = vld [vmem:[#allocation5 + $0x690] sm:$0xff]
    %v361 = vld [vmem:[#allocation5 + $0x698] sm:$0xff]
    %v362 = vld [vmem:[#allocation5 + $0x6a0] sm:$0xff]
    %v363 = vld [vmem:[#allocation5 + $0x6a8] sm:$0xff]
    %v364 = vld [vmem:[#allocation5 + $0x6b0] sm:$0xff]
    %v365 = vld [vmem:[#allocation5 + $0x6b8] sm:$0xff]
    %v366 = vld [vmem:[#allocation5 + $0x6c0] sm:$0xff]
    %v367 = vld [vmem:[#allocation5 + $0x6c8] sm:$0xff]
    %v368 = vld [vmem:[#allocation5 + $0x6d0] sm:$0xff]
    %v369 = vld [vmem:[#allocation5 + $0x6d8] sm:$0xff]
    %v370 = vld [vmem:[#allocation5 + $0x6e0] sm:$0xff]
    %v371 = vld [vmem:[#allocation5 + $0x6e8] sm:$0xff]
    %v372 = vld [vmem:[#allocation5 + $0x6f0] sm:$0xff]
    %v373 = vld [vmem:[#allocation5 + $0x6f8] sm:$0xff]
    %v374 = vld [vmem:[#allocation5 + $0x700] sm:$0xff]
    %v375 = vld [vmem:[#allocation5 + $0x708] sm:$0xff]
    %v376 = vld [vmem:[#allocation5 + $0x710] sm:$0xff]
    %v377 = vld [vmem:[#allocation5 + $0x718] sm:$0xff]
    %v378 = vld [vmem:[#allocation5 + $0x720] sm:$0xff]
    %v379 = vld [vmem:[#allocation5 + $0x728] sm:$0xff]
    %v380 = vld [vmem:[#allocation5 + $0x730] sm:$0xff]
    %v381 = vld [vmem:[#allocation5 + $0x738] sm:$0xff]
    %v382 = vld [vmem:[#allocation5 + $0x740] sm:$0xff]
    %v383 = vld [vmem:[#allocation5 + $0x748] sm:$0xff]
    %v384 = vld [vmem:[#allocation5 + $0x750] sm:$0xff]
    %v385 = vld [vmem:[#allocation5 + $0x758] sm:$0xff]
    %v386 = vld [vmem:[#allocation5 + $0x760] sm:$0xff]
    %v387 = vld [vmem:[#allocation5 + $0x768] sm:$0xff]
    %v388 = vld [vmem:[#allocation5 + $0x770] sm:$0xff]
    %v389 = vld [vmem:[#allocation5 + $0x778] sm:$0xff]
    %v390 = vld [vmem:[#allocation5 + $0x780] sm:$0xff]
    %v391 = vld [vmem:[#allocation5 + $0x788] sm:$0xff]
    %v392 = vld [vmem:[#allocation5 + $0x790] sm:$0xff]
    %v393 = vld [vmem:[#allocation5 + $0x798] sm:$0xff]
    %v394 = vld [vmem:[#allocation5 + $0x7a0] sm:$0xff]
    %v395 = vld [vmem:[#allocation5 + $0x7a8] sm:$0xff]
    %v396 = vld [vmem:[#allocation5 + $0x7b0] sm:$0xff]
    %v397 = vld [vmem:[#allocation5 + $0x7b8] sm:$0xff]
    %v398 = vld [vmem:[#allocation5 + $0x7c0] sm:$0xff]
    %v399 = vld [vmem:[#allocation5 + $0x7c8] sm:$0xff]
    %v400 = vld [vmem:[#allocation5 + $0x7d0] sm:$0xff]
    %v401 = vld [vmem:[#allocation5 + $0x7d8] sm:$0xff]
    %v402 = vld [vmem:[#allocation5 + $0x7e0] sm:$0xff]
    %v403 = vld [vmem:[#allocation5 + $0x7e8] sm:$0xff]
    %v404 = vld [vmem:[#allocation5 + $0x7f0] sm:$0xff]
    %v405 = vld [vmem:[#allocation5 + $0x7f8] sm:$0xff]
    %v406 = vld [vmem:[#allocation5 + $0x800] sm:$0xff]
    %v407 = vld [vmem:[#allocation5 + $0x808] sm:$0xff]
    %v408 = vld [vmem:[#allocation5 + $0x810] sm:$0xff]
    %v409 = vld [vmem:[#allocation5 + $0x818] sm:$0xff]
    %v410 = vld [vmem:[#allocation5 + $0x820] sm:$0xff]
    %v411 = vld [vmem:[#allocation5 + $0x828] sm:$0xff]
    %v412 = vld [vmem:[#allocation5 + $0x830] sm:$0xff]
    %v413 = vld [vmem:[#allocation5 + $0x838] sm:$0xff]
    %v414 = vld [vmem:[#allocation5 + $0x840] sm:$0xff]
    %v415 = vld [vmem:[#allocation5 + $0x848] sm:$0xff]
    %v416 = vld [vmem:[#allocation5 + $0x850] sm:$0xff]
    %v417 = vld [vmem:[#allocation5 + $0x858] sm:$0xff]
    %v418 = vld [vmem:[#allocation5 + $0x860] sm:$0xff]
    %v419 = vld [vmem:[#allocation5 + $0x868] sm:$0xff]
    %v420 = vld [vmem:[#allocation5 + $0x870] sm:$0xff]
    %v421 = vld [vmem:[#allocation5 + $0x878] sm:$0xff]
    %v422 = vld [vmem:[#allocation5 + $0x880] sm:$0xff]
    %v423 = vld [vmem:[#allocation5 + $0x888] sm:$0xff]
    %v424 = vld [vmem:[#allocation5 + $0x890] sm:$0xff]
    %v425 = vld [vmem:[#allocation5 + $0x898] sm:$0xff]
    %v426 = vld [vmem:[#allocation5 + $0x8a0] sm:$0xff]
    %v427 = vld [vmem:[#allocation5 + $0x8a8] sm:$0xff]
    %v428 = vld [vmem:[#allocation5 + $0x8b0] sm:$0xff]
    %v429 = vld [vmem:[#allocation5 + $0x8b8] sm:$0xff]
    %v430 = vld [vmem:[#allocation5 + $0x8c0] sm:$0xff]
    %v431 = vld [vmem:[#allocation5 + $0x8c8] sm:$0xff]
    %v432 = vld [vmem:[#allocation5 + $0x8d0] sm:$0xff]
    %v433 = vld [vmem:[#allocation5 + $0x8d8] sm:$0xff]
    %v434 = vld [vmem:[#allocation5 + $0x8e0] sm:$0xff]
    %v435 = vld [vmem:[#allocation5 + $0x8e8] sm:$0xff]
    %v436 = vld [vmem:[#allocation5 + $0x8f0] sm:$0xff]
    %v437 = vld [vmem:[#allocation5 + $0x8f8] sm:$0xff]
    %v438 = vld [vmem:[#allocation7] sm:$0x1]
    %v440 = vperm.slane %v438, 0
    %442 = vmatpush.msra.mxu0 %v165
    %443 = vmatpush.msra.mxu0 %v164
    %444 = vmatpush.msra.mxu0 %v163
    %445 = vmatpush.msra.mxu0 %v162
    %446 = vmatpush.msra.mxu0 %v161
    %447 = vmatpush.msra.mxu0 %v160
    %448 = vmatpush.msra.mxu0 %v159
    %449 = vmatpush.msra.mxu0 %v158
    %450 = vmatpush.msra.mxu0 %v157
    %451 = vmatpush.msra.mxu0 %v156
    %452 = vmatpush.msra.mxu0 %v155
    %453 = vmatpush.msra.mxu0 %v154
    %454 = vmatpush.msra.mxu0 %v153
    %455 = vmatpush.msra.mxu0 %v152
    %456 = vmatpush.msra.mxu0 %v151
    %457 = vmatpush.msra.mxu0 %v150
    %458 = vmatmul.f32.gmra.mxu0 %v132
    %v459 = vpop.f32.mrf.mxu0
    %v460 = vadd.f32 %v440, %v459
    %461 = vdwg.mxu0
    %462 = vmatpush.msra.mxu0 %v181
    %463 = vmatpush.msra.mxu0 %v180
    %464 = vmatpush.msra.mxu0 %v179
    %465 = vmatpush.msra.mxu0 %v178
    %466 = vmatpush.msra.mxu0 %v177
    %467 = vmatpush.msra.mxu0 %v176
    %468 = vmatpush.msra.mxu0 %v175
    %469 = vmatpush.msra.mxu0 %v174
    %470 = vmatpush.msra.mxu0 %v173
    %471 = vmatpush.msra.mxu0 %v172
    %472 = vmatpush.msra.mxu0 %v171
    %473 = vmatpush.msra.mxu0 %v170
    %474 = vmatpush.msra.mxu0 %v169
    %475 = vmatpush.msra.mxu0 %v168
    %476 = vmatpush.msra.mxu0 %v167
    %477 = vmatpush.msra.mxu0 %v166
    %478 = vmatmul.f32.gmra.mxu0 %v133
    %v479 = vpop.f32.mrf.mxu0
    %v480 = vadd.f32 %v460, %v479
    %481 = vdwg.mxu0
    %482 = vmatpush.msra.mxu0 %v197
    %483 = vmatpush.msra.mxu0 %v196
    %484 = vmatpush.msra.mxu0 %v195
    %485 = vmatpush.msra.mxu0 %v194
    %486 = vmatpush.msra.mxu0 %v193
    %487 = vmatpush.msra.mxu0 %v192
    %488 = vmatpush.msra.mxu0 %v191
    %489 = vmatpush.msra.mxu0 %v190
    %490 = vmatpush.msra.mxu0 %v189
    %491 = vmatpush.msra.mxu0 %v188
    %492 = vmatpush.msra.mxu0 %v187
    %493 = vmatpush.msra.mxu0 %v186
    %494 = vmatpush.msra.mxu0 %v185
    %495 = vmatpush.msra.mxu0 %v184
    %496 = vmatpush.msra.mxu0 %v183
    %497 = vmatpush.msra.mxu0 %v182
    %498 = vmatmul.f32.gmra.mxu0 %v134
    %v499 = vpop.f32.mrf.mxu0
    %v500 = vadd.f32 %v480, %v499
    %501 = vdwg.mxu0
    %502 = vmatpush.msra.mxu0 %v213
    %503 = vmatpush.msra.mxu0 %v212
    %504 = vmatpush.msra.mxu0 %v211
    %505 = vmatpush.msra.mxu0 %v210
    %506 = vmatpush.msra.mxu0 %v209
    %507 = vmatpush.msra.mxu0 %v208
    %508 = vmatpush.msra.mxu0 %v207
    %509 = vmatpush.msra.mxu0 %v206
    %510 = vmatpush.msra.mxu0 %v205
    %511 = vmatpush.msra.mxu0 %v204
    %512 = vmatpush.msra.mxu0 %v203
    %513 = vmatpush.msra.mxu0 %v202
    %514 = vmatpush.msra.mxu0 %v201
    %515 = vmatpush.msra.mxu0 %v200
    %516 = vmatpush.msra.mxu0 %v199
    %517 = vmatpush.msra.mxu0 %v198
    %518 = vmatmul.f32.gmra.mxu0 %v135
    %v519 = vpop.f32.mrf.mxu0
    %v520 = vadd.f32 %v500, %v519
    %521 = vdwg.mxu0
    %522 = vmatpush.msra.mxu0 %v229
    %523 = vmatpush.msra.mxu0 %v228
    %524 = vmatpush.msra.mxu0 %v227
    %525 = vmatpush.msra.mxu0 %v226
    %526 = vmatpush.msra.mxu0 %v225
    %527 = vmatpush.msra.mxu0 %v224
    %528 = vmatpush.msra.mxu0 %v223
    %529 = vmatpush.msra.mxu0 %v222
    %530 = vmatpush.msra.mxu0 %v221
    %531 = vmatpush.msra.mxu0 %v220
    %532 = vmatpush.msra.mxu0 %v219
    %533 = vmatpush.msra.mxu0 %v218
    %534 = vmatpush.msra.mxu0 %v217
    %535 = vmatpush.msra.mxu0 %v216
    %536 = vmatpush.msra.mxu0 %v215
    %537 = vmatpush.msra.mxu0 %v214
    %538 = vmatmul.f32.gmra.mxu0 %v136
    %v539 = vpop.f32.mrf.mxu0
    %v540 = vadd.f32 %v520, %v539
    %541 = vdwg.mxu0
    %542 = vmatpush.msra.mxu0 %v245
    %543 = vmatpush.msra.mxu0 %v244
    %544 = vmatpush.msra.mxu0 %v243
    %545 = vmatpush.msra.mxu0 %v242
    %546 = vmatpush.msra.mxu0 %v241
    %547 = vmatpush.msra.mxu0 %v240
    %548 = vmatpush.msra.mxu0 %v239
    %549 = vmatpush.msra.mxu0 %v238
    %550 = vmatpush.msra.mxu0 %v237
    %551 = vmatpush.msra.mxu0 %v236
    %552 = vmatpush.msra.mxu0 %v235
    %553 = vmatpush.msra.mxu0 %v234
    %554 = vmatpush.msra.mxu0 %v233
    %555 = vmatpush.msra.mxu0 %v232
    %556 = vmatpush.msra.mxu0 %v231
    %557 = vmatpush.msra.mxu0 %v230
    %558 = vmatmul.f32.gmra.mxu0 %v137
    %v559 = vpop.f32.mrf.mxu0
    %v560 = vadd.f32 %v540, %v559
    %561 = vdwg.mxu0
    %562 = vmatpush.msra.mxu0 %v261
    %563 = vmatpush.msra.mxu0 %v260
    %564 = vmatpush.msra.mxu0 %v259
    %565 = vmatpush.msra.mxu0 %v258
    %566 = vmatpush.msra.mxu0 %v257
    %567 = vmatpush.msra.mxu0 %v256
    %568 = vmatpush.msra.mxu0 %v255
    %569 = vmatpush.msra.mxu0 %v254
    %570 = vmatpush.msra.mxu0 %v253
    %571 = vmatpush.msra.mxu0 %v252
    %572 = vmatpush.msra.mxu0 %v251
    %573 = vmatpush.msra.mxu0 %v250
    %574 = vmatpush.msra.mxu0 %v249
    %575 = vmatpush.msra.mxu0 %v248
    %576 = vmatpush.msra.mxu0 %v247
    %577 = vmatpush.msra.mxu0 %v246
    %578 = vmatmul.f32.gmra.mxu0 %v138
    %v579 = vpop.f32.mrf.mxu0
    %v580 = vadd.f32 %v560, %v579
    %581 = vdwg.mxu0
    %582 = vmatpush.msra.mxu0 %v277
    %583 = vmatpush.msra.mxu0 %v276
    %584 = vmatpush.msra.mxu0 %v275
    %585 = vmatpush.msra.mxu0 %v274
    %586 = vmatpush.msra.mxu0 %v273
    %587 = vmatpush.msra.mxu0 %v272
    %588 = vmatpush.msra.mxu0 %v271
    %589 = vmatpush.msra.mxu0 %v270
    %590 = vmatpush.msra.mxu0 %v269
    %591 = vmatpush.msra.mxu0 %v268
    %592 = vmatpush.msra.mxu0 %v267
    %593 = vmatpush.msra.mxu0 %v266
    %594 = vmatpush.msra.mxu0 %v265
    %595 = vmatpush.msra.mxu0 %v264
    %596 = vmatpush.msra.mxu0 %v263
    %597 = vmatpush.msra.mxu0 %v262
    %598 = vmatmul.f32.gmra.mxu0 %v139
    %v599 = vpop.f32.mrf.mxu0
    %v600 = vadd.f32 %v580, %v599
    %601 = vdwg.mxu0
    %602 = vmatpush.msra.mxu0 %v293
    %603 = vmatpush.msra.mxu0 %v292
    %604 = vmatpush.msra.mxu0 %v291
    %605 = vmatpush.msra.mxu0 %v290
    %606 = vmatpush.msra.mxu0 %v289
    %607 = vmatpush.msra.mxu0 %v288
    %608 = vmatpush.msra.mxu0 %v287
    %609 = vmatpush.msra.mxu0 %v286
    %610 = vmatpush.msra.mxu0 %v285
    %611 = vmatpush.msra.mxu0 %v284
    %612 = vmatpush.msra.mxu0 %v283
    %613 = vmatpush.msra.mxu0 %v282
    %614 = vmatpush.msra.mxu0 %v281
    %615 = vmatpush.msra.mxu0 %v280
    %616 = vmatpush.msra.mxu0 %v279
    %617 = vmatpush.msra.mxu0 %v278
    %618 = vmatmul.f32.gmra.mxu0 %v140
    %v619 = vpop.f32.mrf.mxu0
    %v620 = vadd.f32 %v600, %v619
    %621 = vdwg.mxu0
    %622 = vmatpush.msra.mxu0 %v309
    %623 = vmatpush.msra.mxu0 %v308
    %624 = vmatpush.msra.mxu0 %v307
    %625 = vmatpush.msra.mxu0 %v306
    %626 = vmatpush.msra.mxu0 %v305
    %627 = vmatpush.msra.mxu0 %v304
    %628 = vmatpush.msra.mxu0 %v303
    %629 = vmatpush.msra.mxu0 %v302
    %630 = vmatpush.msra.mxu0 %v301
    %631 = vmatpush.msra.mxu0 %v300
    %632 = vmatpush.msra.mxu0 %v299
    %633 = vmatpush.msra.mxu0 %v298
    %634 = vmatpush.msra.mxu0 %v297
    %635 = vmatpush.msra.mxu0 %v296
    %636 = vmatpush.msra.mxu0 %v295
    %637 = vmatpush.msra.mxu0 %v294
    %638 = vmatmul.f32.gmra.mxu0 %v141
    %v639 = vpop.f32.mrf.mxu0
    %v640 = vadd.f32 %v620, %v639
    %641 = vdwg.mxu0
    %642 = vmatpush.msra.mxu0 %v325
    %643 = vmatpush.msra.mxu0 %v324
    %644 = vmatpush.msra.mxu0 %v323
    %645 = vmatpush.msra.mxu0 %v322
    %646 = vmatpush.msra.mxu0 %v321
    %647 = vmatpush.msra.mxu0 %v320
    %648 = vmatpush.msra.mxu0 %v319
    %649 = vmatpush.msra.mxu0 %v318
    %650 = vmatpush.msra.mxu0 %v317
    %651 = vmatpush.msra.mxu0 %v316
    %652 = vmatpush.msra.mxu0 %v315
    %653 = vmatpush.msra.mxu0 %v314
    %654 = vmatpush.msra.mxu0 %v313
    %655 = vmatpush.msra.mxu0 %v312
    %656 = vmatpush.msra.mxu0 %v311
    %657 = vmatpush.msra.mxu0 %v310
    %658 = vmatmul.f32.gmra.mxu0 %v142
    %v659 = vpop.f32.mrf.mxu0
    %v660 = vadd.f32 %v640, %v659
    %661 = vdwg.mxu0
    %662 = vmatpush.msra.mxu0 %v341
    %663 = vmatpush.msra.mxu0 %v340
    %664 = vmatpush.msra.mxu0 %v339
    %665 = vmatpush.msra.mxu0 %v338
    %666 = vmatpush.msra.mxu0 %v337
    %667 = vmatpush.msra.mxu0 %v336
    %668 = vmatpush.msra.mxu0 %v335
    %669 = vmatpush.msra.mxu0 %v334
    %670 = vmatpush.msra.mxu0 %v333
    %671 = vmatpush.msra.mxu0 %v332
    %672 = vmatpush.msra.mxu0 %v331
    %673 = vmatpush.msra.mxu0 %v330
    %674 = vmatpush.msra.mxu0 %v329
    %675 = vmatpush.msra.mxu0 %v328
    %676 = vmatpush.msra.mxu0 %v327
    %677 = vmatpush.msra.mxu0 %v326
    %678 = vmatmul.f32.gmra.mxu0 %v143
    %v679 = vpop.f32.mrf.mxu0
    %v680 = vadd.f32 %v660, %v679
    %681 = vdwg.mxu0
    %682 = vmatpush.msra.mxu0 %v357
    %683 = vmatpush.msra.mxu0 %v356
    %684 = vmatpush.msra.mxu0 %v355
    %685 = vmatpush.msra.mxu0 %v354
    %686 = vmatpush.msra.mxu0 %v353
    %687 = vmatpush.msra.mxu0 %v352
    %688 = vmatpush.msra.mxu0 %v351
    %689 = vmatpush.msra.mxu0 %v350
    %690 = vmatpush.msra.mxu0 %v349
    %691 = vmatpush.msra.mxu0 %v348
    %692 = vmatpush.msra.mxu0 %v347
    %693 = vmatpush.msra.mxu0 %v346
    %694 = vmatpush.msra.mxu0 %v345
    %695 = vmatpush.msra.mxu0 %v344
    %696 = vmatpush.msra.mxu0 %v343
    %697 = vmatpush.msra.mxu0 %v342
    %698 = vmatmul.f32.gmra.mxu0 %v144
    %v699 = vpop.f32.mrf.mxu0
    %v700 = vadd.f32 %v680, %v699
    %701 = vdwg.mxu0
    %702 = vmatpush.msra.mxu0 %v373
    %703 = vmatpush.msra.mxu0 %v372
    %704 = vmatpush.msra.mxu0 %v371
    %705 = vmatpush.msra.mxu0 %v370
    %706 = vmatpush.msra.mxu0 %v369
    %707 = vmatpush.msra.mxu0 %v368
    %708 = vmatpush.msra.mxu0 %v367
    %709 = vmatpush.msra.mxu0 %v366
    %710 = vmatpush.msra.mxu0 %v365
    %711 = vmatpush.msra.mxu0 %v364
    %712 = vmatpush.msra.mxu0 %v363
    %713 = vmatpush.msra.mxu0 %v362
    %714 = vmatpush.msra.mxu0 %v361
    %715 = vmatpush.msra.mxu0 %v360
    %716 = vmatpush.msra.mxu0 %v359
    %717 = vmatpush.msra.mxu0 %v358
    %718 = vmatmul.f32.gmra.mxu0 %v145
    %v719 = vpop.f32.mrf.mxu0
    %v720 = vadd.f32 %v700, %v719
    %721 = vdwg.mxu0
    %722 = vmatpush.msra.mxu0 %v389
    %723 = vmatpush.msra.mxu0 %v388
    %724 = vmatpush.msra.mxu0 %v387
    %725 = vmatpush.msra.mxu0 %v386
    %726 = vmatpush.msra.mxu0 %v385
    %727 = vmatpush.msra.mxu0 %v384
    %728 = vmatpush.msra.mxu0 %v383
    %729 = vmatpush.msra.mxu0 %v382
    %730 = vmatpush.msra.mxu0 %v381
    %731 = vmatpush.msra.mxu0 %v380
    %732 = vmatpush.msra.mxu0 %v379
    %733 = vmatpush.msra.mxu0 %v378
    %734 = vmatpush.msra.mxu0 %v377
    %735 = vmatpush.msra.mxu0 %v376
    %736 = vmatpush.msra.mxu0 %v375
    %737 = vmatpush.msra.mxu0 %v374
    %738 = vmatmul.f32.gmra.mxu0 %v146
    %v739 = vpop.f32.mrf.mxu0
    %v740 = vadd.f32 %v720, %v739
    %741 = vdwg.mxu0
    %742 = vmatpush.msra.mxu0 %v405
    %743 = vmatpush.msra.mxu0 %v404
    %744 = vmatpush.msra.mxu0 %v403
    %745 = vmatpush.msra.mxu0 %v402
    %746 = vmatpush.msra.mxu0 %v401
    %747 = vmatpush.msra.mxu0 %v400
    %748 = vmatpush.msra.mxu0 %v399
    %749 = vmatpush.msra.mxu0 %v398
    %750 = vmatpush.msra.mxu0 %v397
    %751 = vmatpush.msra.mxu0 %v396
    %752 = vmatpush.msra.mxu0 %v395
    %753 = vmatpush.msra.mxu0 %v394
    %754 = vmatpush.msra.mxu0 %v393
    %755 = vmatpush.msra.mxu0 %v392
    %756 = vmatpush.msra.mxu0 %v391
    %757 = vmatpush.msra.mxu0 %v390
    %758 = vmatmul.f32.gmra.mxu0 %v147
    %v759 = vpop.f32.mrf.mxu0
    %v760 = vadd.f32 %v740, %v759
    %761 = vdwg.mxu0
    %762 = vmatpush.msra.mxu0 %v421
    %763 = vmatpush.msra.mxu0 %v420
    %764 = vmatpush.msra.mxu0 %v419
    %765 = vmatpush.msra.mxu0 %v418
    %766 = vmatpush.msra.mxu0 %v417
    %767 = vmatpush.msra.mxu0 %v416
    %768 = vmatpush.msra.mxu0 %v415
    %769 = vmatpush.msra.mxu0 %v414
    %770 = vmatpush.msra.mxu0 %v413
    %771 = vmatpush.msra.mxu0 %v412
    %772 = vmatpush.msra.mxu0 %v411
    %773 = vmatpush.msra.mxu0 %v410
    %774 = vmatpush.msra.mxu0 %v409
    %775 = vmatpush.msra.mxu0 %v408
    %776 = vmatpush.msra.mxu0 %v407
    %777 = vmatpush.msra.mxu0 %v406
    %778 = vmatmul.f32.gmra.mxu0 %v148
    %v779 = vpop.f32.mrf.mxu0
    %v780 = vadd.f32 %v760, %v779
    %781 = vdwg.mxu0
    %782 = vmatpush.msra.mxu0 %v437
    %783 = vmatpush.msra.mxu0 %v436
    %784 = vmatpush.msra.mxu0 %v435
    %785 = vmatpush.msra.mxu0 %v434
    %786 = vmatpush.msra.mxu0 %v433
    %787 = vmatpush.msra.mxu0 %v432
    %788 = vmatpush.msra.mxu0 %v431
    %789 = vmatpush.msra.mxu0 %v430
    %790 = vmatpush.msra.mxu0 %v429
    %791 = vmatpush.msra.mxu0 %v428
    %792 = vmatpush.msra.mxu0 %v427
    %793 = vmatpush.msra.mxu0 %v426
    %794 = vmatpush.msra.mxu0 %v425
    %795 = vmatpush.msra.mxu0 %v424
    %796 = vmatpush.msra.mxu0 %v423
    %797 = vmatpush.msra.mxu0 %v422
    %798 = vmatmul.f32.gmra.mxu0 %v149
    %v799 = vpop.f32.mrf.mxu0
    %v800 = vadd.f32 %v780, %v799
    %801 = vdwg.mxu0
    %v802 = vmax.f32 %v800, 0.0
    %v803 = vld [vmem:[%s3] sm:$0xff]
    %v804 = vld [vmem:[%s3 + $0x8] sm:$0xff]
    %v805 = vld [vmem:[%s3 + $0x10] sm:$0xff]
    %v806 = vld [vmem:[%s3 + $0x18] sm:$0xff]
    %v807 = vld [vmem:[%s3 + $0x20] sm:$0xff]
    %v808 = vld [vmem:[%s3 + $0x28] sm:$0xff]
    %v809 = vld [vmem:[%s3 + $0x30] sm:$0xff]
    %v810 = vld [vmem:[%s3 + $0x38] sm:$0xff]
    %v811 = vld [vmem:[%s3 + $0x40] sm:$0xff]
    %v812 = vld [vmem:[%s3 + $0x48] sm:$0xff]
    %v813 = vld [vmem:[%s3 + $0x50] sm:$0xff]
    %v814 = vld [vmem:[%s3 + $0x58] sm:$0xff]
    %v815 = vld [vmem:[%s3 + $0x60] sm:$0xff]
    %v816 = vld [vmem:[%s3 + $0x68] sm:$0xff]
    %v817 = vld [vmem:[%s3 + $0x70] sm:$0xff]
    %v818 = vld [vmem:[%s3 + $0x78] sm:$0xff]
    %v819 = vld [vmem:[#allocation8] sm:$0x1]
    %v821 = vperm.slane %v819, 0
    %823 = vmatpush.msra.mxu0 %v818
    %824 = vmatpush.msra.mxu0 %v817
    %825 = vmatpush.msra.mxu0 %v816
    %826 = vmatpush.msra.mxu0 %v815
    %827 = vmatpush.msra.mxu0 %v814
    %828 = vmatpush.msra.mxu0 %v813
    %829 = vmatpush.msra.mxu0 %v812
    %830 = vmatpush.msra.mxu0 %v811
    %831 = vmatpush.msra.mxu0 %v810
    %832 = vmatpush.msra.mxu0 %v809
    %833 = vmatpush.msra.mxu0 %v808
    %834 = vmatpush.msra.mxu0 %v807
    %835 = vmatpush.msra.mxu0 %v806
    %836 = vmatpush.msra.mxu0 %v805
    %837 = vmatpush.msra.mxu0 %v804
    %838 = vmatpush.msra.mxu0 %v803
    %839 = vmatmul.f32.gmra.mxu0 %v802
    %v840 = vpop.f32.mrf.mxu0
    %v841 = vadd.f32 %v821, %v840
    %842 = vdwg.mxu0
    %v843 = vmax.f32 %v841, 0.0
    %v844 = vld [vmem:[%s5] sm:$0xff]
    %v845 = vld [vmem:[%s5 + $0x8] sm:$0xff]
    %v846 = vld [vmem:[%s5 + $0x10] sm:$0xff]
    %v847 = vld [vmem:[%s5 + $0x18] sm:$0xff]
    %v848 = vld [vmem:[%s5 + $0x20] sm:$0xff]
    %v849 = vld [vmem:[%s5 + $0x28] sm:$0xff]
    %v850 = vld [vmem:[%s5 + $0x30] sm:$0xff]
    %v851 = vld [vmem:[%s5 + $0x38] sm:$0xff]
    %v852 = vld [vmem:[#allocation10] sm:$0x1]
    %v854 = vperm.slane %v852, 0
    %vm856 = vcmask 523264
    %v858 = vsel %vm856, %v843, 0
    %860 = vmatpush.msra.mxu0 0.0
    %861 = vmatpush.msra.mxu0 0.0
    %862 = vmatpush.msra.mxu0 0.0
    %863 = vmatpush.msra.mxu0 0.0
    %864 = vmatpush.msra.mxu0 0.0
    %865 = vmatpush.msra.mxu0 0.0
    %866 = vmatpush.msra.mxu0 0.0
    %867 = vmatpush.msra.mxu0 0.0
    %868 = vmatpush.msra.mxu0 %v851
    %869 = vmatpush.msra.mxu0 %v850
    %870 = vmatpush.msra.mxu0 %v849
    %871 = vmatpush.msra.mxu0 %v848
    %872 = vmatpush.msra.mxu0 %v847
    %873 = vmatpush.msra.mxu0 %v846
    %874 = vmatpush.msra.mxu0 %v845
    %875 = vmatpush.msra.mxu0 %v844
    %876 = vmatmul.f32.gmra.mxu0 %v858
    %v877 = vpop.f32.mrf.mxu0
    %v878 = vadd.f32 %v854, %v877
    %879 = vdwg.mxu0
    %v880 = vmax.f32 %v878, 0.0
    %v881 = vld [vmem:[#allocation11] sm:$0xff]
    %v882 = vld [vmem:[#allocation11 + $0x8] sm:$0xff]
    %v883 = vld [vmem:[#allocation11 + $0x10] sm:$0xff]
    %v884 = vld [vmem:[#allocation11 + $0x18] sm:$0xff]
    %v885 = vld [vmem:[#allocation13] sm:$0x1]
    %v887 = vperm.slane %v885, 0
    %vm889 = vcmask 261120
    %v891 = vsel %vm889, %v880, 0
    %893 = vmatpush.msra.mxu0 0.0
    %894 = vmatpush.msra.mxu0 0.0
    %895 = vmatpush.msra.mxu0 0.0
    %896 = vmatpush.msra.mxu0 0.0
    %897 = vmatpush.msra.mxu0 0.0
    %898 = vmatpush.msra.mxu0 0.0
    %899 = vmatpush.msra.mxu0 0.0
    %900 = vmatpush.msra.mxu0 0.0
    %901 = vmatpush.msra.mxu0 0.0
    %902 = vmatpush.msra.mxu0 0.0
    %903 = vmatpush.msra.mxu0 0.0
    %904 = vmatpush.msra.mxu0 0.0
    %905 = vmatpush.msra.mxu0 %v884
    %906 = vmatpush.msra.mxu0 %v883
    %907 = vmatpush.msra.mxu0 %v882
    %908 = vmatpush.msra.mxu0 %v881
    %909 = vmatmul.f32.gmra.mxu0 %v891
    %v910 = vpop.f32.mrf.mxu0
    %v911 = vadd.f32 %v887, %v910
    %912 = vdwg.mxu0
    %913 = vst [vmem:[#allocation14] sm:$0xff] %v911
    // Predicated region
    $region66: #{tpu_custom_call.1} parent=1 // pred_check
      _
    $region67: #{tpu_custom_call.1} parent=1 // pred_check_branch
      %915 = sbr.rel (0) target = $region69
    $region68: #{tpu_custom_call.1} parent=1 // pred_region
      %917 = vsyncadd [#allocation4], 0
      %s919 = sshll.u32 [#allocation14], 4
      %s920 = int_to_ptr.vmem [resolvable:$true] %s919
      %s921 = sshll.u32 %s9, 4
      %s922 = int_to_ptr.hbm [resolvable:$true] %s921
      %924 = dma.vmem_to_hbm [thread:$0]  %s920, 128, %s922, [#allocation4]
    $region69: #{tpu_custom_call.1} parent=1 // pred_fallthru
      _
    // Predicated region
    $region70: #{tpu_custom_call.1} parent=1 // pred_check
      _
    $region71: #{tpu_custom_call.1} parent=1 // pred_check_branch
      %926 = sbr.rel (0) target = $region73
    $region72: #{tpu_custom_call.1} parent=1 // pred_region
      %928 = dma.done [#allocation4], 128
    $region73: #{tpu_custom_call.1} parent=1 // pred_fallthru
      _
    %929 = vsyncpa [#allocation3], 1
    %930 = vsyncpa [#allocation6], 1
    %931 = vsyncpa [#allocation9], 1
    %932 = vsyncpa [#allocation12], 1
    %933 = vsyncpa [#allocation4], 1

</llo_original>
